<compile_context>
chip_gen: v7x
topology: tpu7x:2x2x1
jax: 0.10.0
libtpu: 0.0.40
codegen_flags: <defaults>
</compile_context>

<pallas_src>
from typing import NamedTuple

import jax
import jax.numpy as jnp
from jax.experimental import pallas as pl
from jax.experimental.pallas import tpu as pltpu
import numpy as np


def _round_up(x, m):
    return (x + m - 1) // m * m


class LuongMeta(NamedTuple):
    H: int
    V: int
    Gp: int
    Vp: int
    tile_v: int


# --------------------------------------------------------------------------------------
# Kernel
# --------------------------------------------------------------------------------------
def luong_decoder_kernel(tok_ref, emb_ref, h_ref, c_ref,
                         w_ih_ref, w_hh_ref, b_lstm_ref, enc_ref,
                         w_cls_h_ref, w_cls_c_ref, b_cls_ref,
                         logits_ref, aux_ref,
                         h_bf_s, ctx_bf_s, state_s, m_s, l_s):
    del tok_ref  # token already consumed by the embedding BlockSpec index_map
    j = pl.program_id(0)
    H = h_ref.shape[1]
    S = enc_ref.shape[0]
    Gp = w_ih_ref.shape[1] // 4          # lane-padded per-gate width (multiple of 128)
    AUXW = aux_ref.shape[1]

    # ---- recurrence + attention: once, on the first vocab tile; persists in scratch ----
    @pl.when(j == 0)
    def _():
        x = emb_ref[0]                   # (1, H) bf16, scalar-prefetch gathered row
        h_prev = h_ref[...]              # (1, H) f32 (recurrent operand kept in f32)
        c_prev = c_ref[...]

        # gates = x @ W_ih + h @ W_hh + b   (two dots, no lane-axis concat)
        gates = (jnp.dot(x, w_ih_ref[...], preferred_element_type=jnp.float32)
                 + jnp.dot(h_prev, w_hh_ref[...], preferred_element_type=jnp.float32)
                 + b_lstm_ref[...])      # (1, 4*Gp); gate blocks 128-lane aligned
        i_g = jax.nn.sigmoid(gates[:, 0 * Gp:0 * Gp + H])
        f_g = jax.nn.sigmoid(gates[:, 1 * Gp:1 * Gp + H])
        g_g = jnp.tanh(gates[:, 2 * Gp:2 * Gp + H])
        o_g = jax.nn.sigmoid(gates[:, 3 * Gp:3 * Gp + H])
        c_new = f_g * c_prev + i_g * g_g
        h_new = o_g * jnp.tanh(c_new)    # (1, H) f32
        h_bf = h_new.astype(jnp.bfloat16)

        # Luong dot attention; contract enc's H axis directly (no transposed enc copy).
        scores = jax.lax.dot_general(h_bf, enc_ref[...],
                                     (((1,), (1,)), ((), ())),
                                     preferred_element_type=jnp.float32)   # (1, S)
        smax = jnp.max(scores, axis=1, keepdims=True)
        p = jnp.exp(scores - smax)
        attn = p / jnp.sum(p, axis=1, keepdims=True)      # exact: user-visible output
        context = jnp.dot(attn.astype(jnp.bfloat16), enc_ref[...],
                          preferred_element_type=jnp.float32)              # (1, H) f32

        h_bf_s[...] = h_bf
        ctx_bf_s[...] = context.astype(jnp.bfloat16)

        def pad_lanes(v):
            extra = AUXW - v.shape[1]
            if extra == 0:
                return v
            return jnp.concatenate([v, jnp.zeros((1, extra), v.dtype)], axis=1)

        state_s[...] = jnp.concatenate(
            [pad_lanes(h_new), pad_lanes(c_new), pad_lanes(attn)], axis=0)
        m_s[...] = jnp.full((1, 1), jnp.finfo(jnp.float32).min, jnp.float32)
        l_s[...] = jnp.zeros((1, 1), jnp.float32)

    # ---- classifier tile: two dots summed into one f32 accumulator (no concat) ----
    logits = (jnp.dot(h_bf_s[...], w_cls_h_ref[...], preferred_element_type=jnp.float32)
              + jnp.dot(ctx_bf_s[...], w_cls_c_ref[...], preferred_element_type=jnp.float32)
              + b_cls_ref[...])          # (1, TILE_V); padded vocab lanes hold ~-1e30
    logits_ref[...] = logits             # lane-dense tile store (raw logits)

    # ---- online log-sum-exp carried across vocab tiles in VMEM scratch ----
    m_prev = m_s[...]
    m_new = jnp.maximum(m_prev, jnp.max(logits, axis=1, keepdims=True))
    l_s[...] = (l_s[...] * jnp.exp(m_prev - m_new)
                + jnp.sum(jnp.exp(logits - m_new), axis=1, keepdims=True))
    m_s[...] = m_new

    # ---- epilogue: one lane-dense (4, AUXW) store of [h, c, attn, lse] ----
    @pl.when(j == pl.num_programs(0) - 1)
    def _():
        lse = m_s[...] + jnp.log(l_s[...])                # (1, 1)
        aux_ref[...] = jnp.concatenate(
            [state_s[...], jnp.broadcast_to(lse, (1, AUXW))], axis=0)


# --------------------------------------------------------------------------------------
# One-time parameter packing (hoisted out of the per-step call)
# --------------------------------------------------------------------------------------
def pack_luong_decoder_params(emb, w_ih, w_hh, b_ih, b_hh, w_cls, b_cls, tile_v=None):
    """Repack nn.Embedding / nn.LSTM / nn.Linear weights ONCE for the kernel."""
    V, H = emb.shape
    Gp = _round_up(H, 128)                       # lane-aligned per-gate width
    if tile_v is None:
        # Classifier vocab tile: multiple of 128; at real sizes pick per-generation so
        # 2 x (double-buffered 2*H*tile_v bf16) fits the VMEM budget (64 MiB on v7x).
        tile_v = min(_round_up(V, 128), 2048)
    Vp = _round_up(V, tile_v)

    # LSTM weights, transposed, each gate's columns on its own 128-lane-aligned block.
    # Input-side weight in bf16; the *recurrent* weight stays f32 so h_prev never goes
    # through a bf16 matmul (autoregressive drift concern).
    w_ih_p = jnp.zeros((H, 4 * Gp), jnp.float32)
    w_hh_p = jnp.zeros((H, 4 * Gp), jnp.float32)
    b_lstm = jnp.zeros((1, 4 * Gp), jnp.float32)
    b_sum = (b_ih + b_hh).reshape(1, 4 * H)
    for k in range(4):
        w_ih_p = w_ih_p.at[:, k * Gp:k * Gp + H].set(w_ih.T[:, k * H:(k + 1) * H])
        w_hh_p = w_hh_p.at[:, k * Gp:k * Gp + H].set(w_hh.T[:, k * H:(k + 1) * H])
        b_lstm = b_lstm.at[:, k * Gp:k * Gp + H].set(b_sum[:, k * H:(k + 1) * H])
    w_ih_p = w_ih_p.astype(jnp.bfloat16)

    # Classifier split by input rows (h-part / context-part) so the kernel needs no
    # lane-axis concat; vocab padded to Vp with zero weight columns and -1e30 bias so
    # padded lanes vanish from the log-sum-exp and are sliced off wrapper-side.
    w_cls_h = (jnp.zeros((H, Vp), jnp.float32).at[:, :V]
               .set(w_cls[:, :H].T).astype(jnp.bfloat16))
    w_cls_c = (jnp.zeros((H, Vp), jnp.float32).at[:, :V]
               .set(w_cls[:, H:].T).astype(jnp.bfloat16))
    b_cls_p = jnp.full((1, Vp), -1e30, jnp.float32).at[:, :V].set(b_cls)

    emb3 = emb.astype(jnp.bfloat16).reshape(V, 1, H)     # row-gather friendly layout

    params = dict(emb3=emb3, w_ih_p=w_ih_p, w_hh_p=w_hh_p, b_lstm=b_lstm,
                  w_cls_h=w_cls_h, w_cls_c=w_cls_c, b_cls_p=b_cls_p)
    return params, LuongMeta(H=H, V=V, Gp=Gp, Vp=Vp, tile_v=tile_v)


def prepare_encoder(enc):
    """One-time per-sequence encoder cast (hoisted out of the decode loop)."""
    return enc.astype(jnp.bfloat16)


# --------------------------------------------------------------------------------------
# Per-step call (only token clip + pallas_call; no weight repacking)
# --------------------------------------------------------------------------------------
def luong_decoder_step(meta, params, token, h, c, enc_bf):
    """One decode step. Returns (log_probs (1,V), h_new (1,H), c_new (1,H), attn (1,S))."""
    H, V, Gp, Vp, tile_v = meta
    S = enc_bf.shape[0]
    AUXW = _round_up(max(H, S), 128)
    n_tiles = Vp // tile_v

    token = jnp.clip(token.astype(jnp.int32), 0, V - 1)   # OOB gather guard

    # Roofline hint for XLA scheduling around the custom call.
    flops = 2 * (2 * H * 4 * Gp + 2 * H * S + 2 * H * Vp)
    transcendentals = 5 * H + 2 * S + 2 * Vp
    bytes_accessed = int(H * 2 + H * 4 * Gp * 6 + 4 * Gp * 4
                         + 2 * H * Vp * 2 + Vp * 4 + S * H * 2
                         + 2 * H * 4 + Vp * 4 + 4 * AUXW * 4)
    cost = pl.CostEstimate(flops=flops, transcendentals=transcendentals,
                           bytes_accessed=bytes_accessed)

    # Explicit VMEM budget: double-buffered classifier tiles + resident operands.
    vmem_est = (2 * (2 * H * tile_v * 2 + tile_v * 4 + tile_v * 4)
                + H * 4 * Gp * 6 + 4 * Gp * 4 + S * H * 2
                + 2 * H * 4 + H * 2 + 4 * AUXW * 4
                + (3 * AUXW + 2) * 4 + 2 * H * 2)
    vmem_limit = int(max(32 * 1024 * 1024, 2 * vmem_est))

    grid_spec = pltpu.PrefetchScalarGridSpec(
        num_scalar_prefetch=1,
        grid=(n_tiles,),
        in_specs=[
            pl.BlockSpec((1, 1, H), lambda j, tok: (tok[0], 0, 0)),   # embedding row gather
            pl.BlockSpec((1, H), lambda j, tok: (0, 0)),              # h (f32)
            pl.BlockSpec((1, H), lambda j, tok: (0, 0)),              # c (f32)
            pl.BlockSpec((H, 4 * Gp), lambda j, tok: (0, 0)),         # W_ih packed (bf16)
            pl.BlockSpec((H, 4 * Gp), lambda j, tok: (0, 0)),         # W_hh packed (f32)
            pl.BlockSpec((1, 4 * Gp), lambda j, tok: (0, 0)),         # LSTM bias
            pl.BlockSpec((S, H), lambda j, tok: (0, 0)),              # encoder outputs
            pl.BlockSpec((H, tile_v), lambda j, tok: (0, j)),         # W_cls (h rows)
            pl.BlockSpec((H, tile_v), lambda j, tok: (0, j)),         # W_cls (ctx rows)
            pl.BlockSpec((1, tile_v), lambda j, tok: (0, j)),         # classifier bias
        ],
        out_specs=(
            pl.BlockSpec((1, tile_v), lambda j, tok: (0, j)),         # raw logits tiles
            pl.BlockSpec((4, AUXW), lambda j, tok: (0, 0)),           # [h, c, attn, lse]
        ),
        scratch_shapes=[
            pltpu.VMEM((1, H), jnp.bfloat16),      # h_new  (classifier operand)
            pltpu.VMEM((1, H), jnp.bfloat16),      # context (classifier operand)
            pltpu.VMEM((3, AUXW), jnp.float32),    # h, c, attn (f32, for one dense store)
            pltpu.VMEM((1, 1), jnp.float32),       # running max
            pltpu.VMEM((1, 1), jnp.float32),       # running sum-exp
        ],
    )

    fn = pl.pallas_call(
        luong_decoder_kernel,
        grid_spec=grid_spec,
        out_shape=(jax.ShapeDtypeStruct((1, Vp), jnp.float32),
                   jax.ShapeDtypeStruct((4, AUXW), jnp.float32)),
        compiler_params=pltpu.CompilerParams(
            dimension_semantics=("arbitrary",),    # online lse carries across vocab tiles
            vmem_limit_bytes=vmem_limit),
        cost_estimate=cost,
    )
    logits, aux = fn(token, params["emb3"], h, c,
                     params["w_ih_p"], params["w_hh_p"], params["b_lstm"],
                     enc_bf, params["w_cls_h"], params["w_cls_c"], params["b_cls_p"])

    lse = aux[3:4, 0:1]                   # log-sum-exp over the real vocab
    return (logits[:, :V] - lse,          # log-probs  (1, V)
            aux[0:1, :H],                 # new h      (1, H)
            aux[1:2, :H],                 # new c      (1, H)
            aux[2:3, :S])                 # attn       (1, S)


# --------------------------------------------------------------------------------------
# Pure-JAX f32 reference mirroring the PyTorch forward
# --------------------------------------------------------------------------------------
def luong_decoder_ref(token, h, c, emb, w_ih, w_hh, b_ih, b_hh, enc, w_cls, b_cls):
    H = h.shape[1]
    x = emb[token[0]].reshape(1, -1)
    gates = x @ w_ih.T + h @ w_hh.T + b_ih + b_hh
    i_g = jax.nn.sigmoid(gates[:, 0:H])
    f_g = jax.nn.sigmoid(gates[:, H:2 * H])
    g_g = jnp.tanh(gates[:, 2 * H:3 * H])
    o_g = jax.nn.sigmoid(gates[:, 3 * H:4 * H])
    c_new = f_g * c + i_g * g_g
    h_new = o_g * jnp.tanh(c_new)
    scores = h_new @ enc.T
    attn = jax.nn.softmax(scores, axis=1)
    context = attn @ enc
    feat = jnp.concatenate([h_new, context], axis=1)
    logits = feat @ w_cls.T + b_cls
    out = jax.nn.log_softmax(logits, axis=1)
    return out, h_new, c_new, attn


if __name__ == "__main__":
    H = 32    # hidden_size
    V = 64    # output_size (vocab)
    S = 8     # encoder sequence length

    key = jax.random.PRNGKey(0)
    ks = jax.random.split(key, 10)

    # Deterministic "parameters" (shapes follow nn.Embedding / nn.LSTM / nn.Linear).
    emb   = jax.random.normal(ks[0], (V, H), jnp.float32) * 0.1
    w_ih  = jax.random.normal(ks[1], (4 * H, H), jnp.float32) * 0.1
    w_hh  = jax.random.normal(ks[2], (4 * H, H), jnp.float32) * 0.1
    b_ih  = jax.random.normal(ks[3], (4 * H,), jnp.float32) * 0.1
    b_hh  = jax.random.normal(ks[4], (4 * H,), jnp.float32) * 0.1
    w_cls = jax.random.normal(ks[5], (V, 2 * H), jnp.float32) * 0.1
    b_cls = jax.random.normal(ks[6], (V,), jnp.float32) * 0.1

    # Inputs: one token index, previous (h, c), encoder outputs (batch=1 squeezed).
    token = jnp.array([5], dtype=jnp.int32)
    h0    = jax.random.normal(ks[7], (1, H), jnp.float32)
    c0    = jax.random.normal(ks[8], (1, H), jnp.float32)
    enc   = jax.random.normal(ks[9], (S, H), jnp.float32)

    # One-time packing (hoisted out of the decode loop); jitted per-step call.
    params, meta = pack_luong_decoder_params(emb, w_ih, w_hh, b_ih, b_hh, w_cls, b_cls)
    enc_bf = prepare_encoder(enc)
    step = jax.jit(luong_decoder_step, static_argnums=(0,))

    out = step(meta, params, token, h0, c0, enc_bf)
    out = jax.block_until_ready(out)

    ref = luong_decoder_ref(token, h0, c0, emb, w_ih, w_hh, b_ih, b_hh, enc, w_cls, b_cls)

    # bf16 MXU inputs (f32 accumulation) => looser tolerances than pure f32.
    for got, exp in zip(out, ref):
        np.testing.assert_allclose(np.asarray(got), np.asarray(exp),
                                   atol=3e-2, rtol=3e-2)

    print("KERNEL_OK")
</pallas_src>

<mosaic_0001>
module attributes {stable_mosaic.version = 11 : i64} {
  func.func @luong_decoder_kernel(%arg0: i32, %arg1: memref<1xi32, #tpu.memory_space<smem>>, %arg2: memref<1x1x32xbf16, #tpu.memory_space<vmem>>, %arg3: memref<1x32xf32, #tpu.memory_space<vmem>>, %arg4: memref<1x32xf32, #tpu.memory_space<vmem>>, %arg5: memref<32x512xbf16, #tpu.memory_space<vmem>>, %arg6: memref<32x512xf32, #tpu.memory_space<vmem>>, %arg7: memref<1x512xf32, #tpu.memory_space<vmem>>, %arg8: memref<8x32xbf16, #tpu.memory_space<vmem>>, %arg9: memref<32x128xbf16, #tpu.memory_space<vmem>>, %arg10: memref<32x128xbf16, #tpu.memory_space<vmem>>, %arg11: memref<1x128xf32, #tpu.memory_space<vmem>>, %arg12: memref<1x128xf32, #tpu.memory_space<vmem>>, %arg13: memref<4x128xf32, #tpu.memory_space<vmem>>, %arg14: memref<1x32xbf16, #tpu.memory_space<vmem>>, %arg15: memref<1x32xbf16, #tpu.memory_space<vmem>>, %arg16: memref<3x128xf32, #tpu.memory_space<vmem>>, %arg17: memref<1x1xf32, #tpu.memory_space<vmem>>, %arg18: memref<1x1xf32, #tpu.memory_space<vmem>>) attributes {dimension_semantics = [#tpu.dimension_semantics<arbitrary>], iteration_bounds = array<i64: 1>, scalar_prefetch = 1 : i64, scratch_operands = 5 : i64, tpu.core_type = #tpu.core_type<tc>, window_params = [{transform_indices = @transform_0, window_bounds = array<i64: 1, 1, 32>}, {pipeline_mode = #tpu.pipeline_mode<synchronous>, transform_indices = @transform_1, window_bounds = array<i64: 1, 32>}, {pipeline_mode = #tpu.pipeline_mode<synchronous>, transform_indices = @transform_2, window_bounds = array<i64: 1, 32>}, {pipeline_mode = #tpu.pipeline_mode<synchronous>, transform_indices = @transform_3, window_bounds = array<i64: 32, 512>}, {pipeline_mode = #tpu.pipeline_mode<synchronous>, transform_indices = @transform_4, window_bounds = array<i64: 32, 512>}, {pipeline_mode = #tpu.pipeline_mode<synchronous>, transform_indices = @transform_5, window_bounds = array<i64: 1, 512>}, {pipeline_mode = #tpu.pipeline_mode<synchronous>, transform_indices = @transform_6, window_bounds = array<i64: 8, 32>}, {transform_indices = @transform_7, window_bounds = array<i64: 32, 128>}, {transform_indices = @transform_8, window_bounds = array<i64: 32, 128>}, {transform_indices = @transform_9, window_bounds = array<i64: 1, 128>}, {transform_indices = @transform_10, window_bounds = array<i64: 1, 128>}, {pipeline_mode = #tpu.pipeline_mode<synchronous>, transform_indices = @transform_11, window_bounds = array<i64: 4, 128>}]} {
    %c0_i32 = arith.constant 0 : i32
    %0 = arith.cmpi eq, %arg0, %c0_i32 : i32
    %1 = arith.extui %0 : i1 to i32
    %c0_i32_0 = arith.constant 0 : i32
    %2 = arith.cmpi ne, %1, %c0_i32_0 : i32
    scf.if %2 {
      %c0_25 = arith.constant 0 : index
      %c0_26 = arith.constant 0 : index
      %c0_27 = arith.constant 0 : index
      %32 = vector.load %arg2[%c0_25, %c0_26, %c0_27] : memref<1x1x32xbf16, #tpu.memory_space<vmem>>, vector<1x1x32xbf16>
      %33 = vector.shape_cast %32 : vector<1x1x32xbf16> to vector<1x32xbf16>
      %c0_28 = arith.constant 0 : index
      %c0_29 = arith.constant 0 : index
      %34 = vector.load %arg3[%c0_28, %c0_29] : memref<1x32xf32, #tpu.memory_space<vmem>>, vector<1x32xf32>
      %c0_30 = arith.constant 0 : index
      %c0_31 = arith.constant 0 : index
      %35 = vector.load %arg4[%c0_30, %c0_31] : memref<1x32xf32, #tpu.memory_space<vmem>>, vector<1x32xf32>
      %c0_32 = arith.constant 0 : index
      %c0_33 = arith.constant 0 : index
      %36 = vector.load %arg5[%c0_32, %c0_33] : memref<32x512xbf16, #tpu.memory_space<vmem>>, vector<32x512xbf16>
      %cst_34 = arith.constant dense<0.000000e+00> : vector<1x512xf32>
      %37 = tpu.matmul %33, %36, %cst_34 {dimension_numbers = #tpu.dot_dimension_numbers<[1], [0], [0], [1], [0, 0, 1, 1], [], []>} : vector<1x32xbf16>, vector<32x512xbf16>, vector<1x512xf32> -> vector<1x512xf32>
      %c0_35 = arith.constant 0 : index
      %c0_36 = arith.constant 0 : index
      %38 = vector.load %arg6[%c0_35, %c0_36] : memref<32x512xf32, #tpu.memory_space<vmem>>, vector<32x512xf32>
      %cst_37 = arith.constant dense<0.000000e+00> : vector<1x512xf32>
      %39 = tpu.matmul %34, %38, %cst_37 {dimension_numbers = #tpu.dot_dimension_numbers<[1], [0], [0], [1], [0, 0, 1, 1], [], []>} : vector<1x32xf32>, vector<32x512xf32>, vector<1x512xf32> -> vector<1x512xf32>
      %40 = arith.addf %37, %39 : vector<1x512xf32>
      %c0_38 = arith.constant 0 : index
      %c0_39 = arith.constant 0 : index
      %41 = vector.load %arg7[%c0_38, %c0_39] : memref<1x512xf32, #tpu.memory_space<vmem>>, vector<1x512xf32>
      %42 = arith.addf %40, %41 : vector<1x512xf32>
      %43 = vector.extract_strided_slice %42 {offsets = [0, 0], sizes = [1, 32], strides = [1, 1]} : vector<1x512xf32> to vector<1x32xf32>
      %44 = arith.negf %43 : vector<1x32xf32>
      %45 = math.exp %44 : vector<1x32xf32>
      %cst_40 = arith.constant 1.000000e+00 : f32
      %46 = vector.broadcast %cst_40 : f32 to vector<1x32xf32>
      %47 = arith.addf %46, %45 : vector<1x32xf32>
      %48 = arith.divf %46, %47 : vector<1x32xf32>
      %49 = vector.extract_strided_slice %42 {offsets = [0, 128], sizes = [1, 32], strides = [1, 1]} : vector<1x512xf32> to vector<1x32xf32>
      %50 = arith.negf %49 : vector<1x32xf32>
      %51 = math.exp %50 : vector<1x32xf32>
      %cst_41 = arith.constant 1.000000e+00 : f32
      %52 = vector.broadcast %cst_41 : f32 to vector<1x32xf32>
      %53 = arith.addf %52, %51 : vector<1x32xf32>
      %54 = arith.divf %52, %53 : vector<1x32xf32>
      %55 = vector.extract_strided_slice %42 {offsets = [0, 256], sizes = [1, 32], strides = [1, 1]} : vector<1x512xf32> to vector<1x32xf32>
      %56 = math.tanh %55 : vector<1x32xf32>
      %57 = vector.extract_strided_slice %42 {offsets = [0, 384], sizes = [1, 32], strides = [1, 1]} : vector<1x512xf32> to vector<1x32xf32>
      %58 = arith.negf %57 : vector<1x32xf32>
      %59 = math.exp %58 : vector<1x32xf32>
      %cst_42 = arith.constant 1.000000e+00 : f32
      %60 = vector.broadcast %cst_42 : f32 to vector<1x32xf32>
      %61 = arith.addf %60, %59 : vector<1x32xf32>
      %62 = arith.divf %60, %61 : vector<1x32xf32>
      %63 = arith.mulf %54, %35 : vector<1x32xf32>
      %64 = arith.mulf %48, %56 : vector<1x32xf32>
      %65 = arith.addf %63, %64 : vector<1x32xf32>
      %66 = math.tanh %65 : vector<1x32xf32>
      %67 = arith.mulf %62, %66 : vector<1x32xf32>
      %68 = arith.truncf %67 : vector<1x32xf32> to vector<1x32xbf16>
      %c0_43 = arith.constant 0 : index
      %c0_44 = arith.constant 0 : index
      %69 = vector.load %arg8[%c0_43, %c0_44] : memref<8x32xbf16, #tpu.memory_space<vmem>>, vector<8x32xbf16>
      %cst_45 = arith.constant dense<0.000000e+00> : vector<1x8xf32>
      %70 = tpu.matmul %68, %69, %cst_45 {dimension_numbers = #tpu.dot_dimension_numbers<[1], [1], [0], [0], [0, 0, 1, 0], [], []>} : vector<1x32xbf16>, vector<8x32xbf16>, vector<1x8xf32> -> vector<1x8xf32>
      %cst_46 = arith.constant dense<0xFF800000> : vector<1xf32>
      %71 = vector.multi_reduction <maximumf>, %70, %cst_46 [1] : vector<1x8xf32> to vector<1xf32>
      %72 = vector.shape_cast %71 : vector<1xf32> to vector<1x1xf32>
      %73 = vector.broadcast %72 : vector<1x1xf32> to vector<1x8xf32>
      %74 = arith.subf %70, %73 : vector<1x8xf32>
      %75 = math.exp %74 : vector<1x8xf32>
      %cst_47 = arith.constant dense<0.000000e+00> : vector<1xf32>
      %76 = vector.multi_reduction <add>, %75, %cst_47 [1] : vector<1x8xf32> to vector<1xf32>
      %77 = vector.shape_cast %76 : vector<1xf32> to vector<1x1xf32>
      %78 = vector.broadcast %77 : vector<1x1xf32> to vector<1x8xf32>
      %79 = arith.divf %75, %78 : vector<1x8xf32>
      %80 = arith.truncf %79 : vector<1x8xf32> to vector<1x8xbf16>
      %c0_48 = arith.constant 0 : index
      %c0_49 = arith.constant 0 : index
      %81 = vector.load %arg8[%c0_48, %c0_49] : memref<8x32xbf16, #tpu.memory_space<vmem>>, vector<8x32xbf16>
      %cst_50 = arith.constant dense<0.000000e+00> : vector<1x32xf32>
      %82 = tpu.matmul %80, %81, %cst_50 {dimension_numbers = #tpu.dot_dimension_numbers<[1], [0], [0], [1], [0, 0, 1, 1], [], []>} : vector<1x8xbf16>, vector<8x32xbf16>, vector<1x32xf32> -> vector<1x32xf32>
      %c0_51 = arith.constant 0 : index
      %c0_52 = arith.constant 0 : index
      %83 = vector.load %arg14[%c0_51, %c0_52] : memref<1x32xbf16, #tpu.memory_space<vmem>>, vector<1x32xbf16>
      tpu.vector_store %arg14[%c0_51, %c0_52], %68 {strides = array<i32>} : memref<1x32xbf16, #tpu.memory_space<vmem>>, vector<1x32xbf16>,
      %84 = arith.truncf %82 : vector<1x32xf32> to vector<1x32xbf16>
      %c0_53 = arith.constant 0 : index
      %c0_54 = arith.constant 0 : index
      %85 = vector.load %arg15[%c0_53, %c0_54] : memref<1x32xbf16, #tpu.memory_space<vmem>>, vector<1x32xbf16>
      tpu.vector_store %arg15[%c0_53, %c0_54], %84 {strides = array<i32>} : memref<1x32xbf16, #tpu.memory_space<vmem>>, vector<1x32xbf16>,
      %cst_55 = arith.constant 0.000000e+00 : f32
      %86 = vector.broadcast %cst_55 : f32 to vector<1x96xf32>
      %87 = tpu.concatenate %67, %86 in 1 : vector<1x32xf32>, vector<1x96xf32> -> vector<1x128xf32>
      %cst_56 = arith.constant 0.000000e+00 : f32
      %88 = vector.broadcast %cst_56 : f32 to vector<1x96xf32>
      %89 = tpu.concatenate %65, %88 in 1 : vector<1x32xf32>, vector<1x96xf32> -> vector<1x128xf32>
      %cst_57 = arith.constant 0.000000e+00 : f32
      %90 = vector.broadcast %cst_57 : f32 to vector<1x120xf32>
      %91 = tpu.concatenate %79, %90 in 1 : vector<1x8xf32>, vector<1x120xf32> -> vector<1x128xf32>
      %92 = tpu.concatenate %87, %89, %91 in 0 : vector<1x128xf32>, vector<1x128xf32>, vector<1x128xf32> -> vector<3x128xf32>
      %c0_58 = arith.constant 0 : index
      %c0_59 = arith.constant 0 : index
      %93 = vector.load %arg16[%c0_58, %c0_59] : memref<3x128xf32, #tpu.memory_space<vmem>>, vector<3x128xf32>
      tpu.vector_store %arg16[%c0_58, %c0_59], %92 {strides = array<i32>} : memref<3x128xf32, #tpu.memory_space<vmem>>, vector<3x128xf32>,
      %cst_60 = arith.constant -3.40282347E+38 : f32
      %94 = vector.broadcast %cst_60 : f32 to vector<1x1xf32>
      %c0_61 = arith.constant 0 : index
      %c0_62 = arith.constant 0 : index
      %95 = vector.load %arg17[%c0_61, %c0_62] : memref<1x1xf32, #tpu.memory_space<vmem>>, vector<1x1xf32>
      tpu.vector_store %arg17[%c0_61, %c0_62], %94 {strides = array<i32>} : memref<1x1xf32, #tpu.memory_space<vmem>>, vector<1x1xf32>,
      %cst_63 = arith.constant 0.000000e+00 : f32
      %96 = vector.broadcast %cst_63 : f32 to vector<1x1xf32>
      %c0_64 = arith.constant 0 : index
      %c0_65 = arith.constant 0 : index
      %97 = vector.load %arg18[%c0_64, %c0_65] : memref<1x1xf32, #tpu.memory_space<vmem>>, vector<1x1xf32>
      tpu.vector_store %arg18[%c0_64, %c0_65], %96 {strides = array<i32>} : memref<1x1xf32, #tpu.memory_space<vmem>>, vector<1x1xf32>,
    } else {
    }
    %c0 = arith.constant 0 : index
    %c0_1 = arith.constant 0 : index
    %3 = vector.load %arg14[%c0, %c0_1] : memref<1x32xbf16, #tpu.memory_space<vmem>>, vector<1x32xbf16>
    %c0_2 = arith.constant 0 : index
    %c0_3 = arith.constant 0 : index
    %4 = vector.load %arg9[%c0_2, %c0_3] : memref<32x128xbf16, #tpu.memory_space<vmem>>, vector<32x128xbf16>
    %cst = arith.constant dense<0.000000e+00> : vector<1x128xf32>
    %5 = tpu.matmul %3, %4, %cst {dimension_numbers = #tpu.dot_dimension_numbers<[1], [0], [0], [1], [0, 0, 1, 1], [], []>} : vector<1x32xbf16>, vector<32x128xbf16>, vector<1x128xf32> -> vector<1x128xf32>
    %c0_4 = arith.constant 0 : index
    %c0_5 = arith.constant 0 : index
    %6 = vector.load %arg15[%c0_4, %c0_5] : memref<1x32xbf16, #tpu.memory_space<vmem>>, vector<1x32xbf16>
    %c0_6 = arith.constant 0 : index
    %c0_7 = arith.constant 0 : index
    %7 = vector.load %arg10[%c0_6, %c0_7] : memref<32x128xbf16, #tpu.memory_space<vmem>>, vector<32x128xbf16>
    %cst_8 = arith.constant dense<0.000000e+00> : vector<1x128xf32>
    %8 = tpu.matmul %6, %7, %cst_8 {dimension_numbers = #tpu.dot_dimension_numbers<[1], [0], [0], [1], [0, 0, 1, 1], [], []>} : vector<1x32xbf16>, vector<32x128xbf16>, vector<1x128xf32> -> vector<1x128xf32>
    %9 = arith.addf %5, %8 : vector<1x128xf32>
    %c0_9 = arith.constant 0 : index
    %c0_10 = arith.constant 0 : index
    %10 = vector.load %arg11[%c0_9, %c0_10] : memref<1x128xf32, #tpu.memory_space<vmem>>, vector<1x128xf32>
    %11 = arith.addf %9, %10 : vector<1x128xf32>
    %c0_11 = arith.constant 0 : index
    %c0_12 = arith.constant 0 : index
    %12 = vector.load %arg12[%c0_11, %c0_12] : memref<1x128xf32, #tpu.memory_space<vmem>>, vector<1x128xf32>
    tpu.vector_store %arg12[%c0_11, %c0_12], %11 {strides = array<i32>} : memref<1x128xf32, #tpu.memory_space<vmem>>, vector<1x128xf32>,
    %c0_13 = arith.constant 0 : index
    %c0_14 = arith.constant 0 : index
    %13 = vector.load %arg17[%c0_13, %c0_14] : memref<1x1xf32, #tpu.memory_space<vmem>>, vector<1x1xf32>
    %cst_15 = arith.constant dense<0xFF800000> : vector<1xf32>
    %14 = vector.multi_reduction <maximumf>, %11, %cst_15 [1] : vector<1x128xf32> to vector<1xf32>
    %15 = vector.shape_cast %14 : vector<1xf32> to vector<1x1xf32>
    %16 = arith.maximumf %13, %15 : vector<1x1xf32>
    %c0_16 = arith.constant 0 : index
    %c0_17 = arith.constant 0 : index
    %17 = vector.load %arg18[%c0_16, %c0_17] : memref<1x1xf32, #tpu.memory_space<vmem>>, vector<1x1xf32>
    %18 = arith.subf %13, %16 : vector<1x1xf32>
    %19 = math.exp %18 : vector<1x1xf32>
    %20 = arith.mulf %17, %19 : vector<1x1xf32>
    %21 = vector.broadcast %16 : vector<1x1xf32> to vector<1x128xf32>
    %22 = arith.subf %11, %21 : vector<1x128xf32>
    %23 = math.exp %22 : vector<1x128xf32>
    %cst_18 = arith.constant dense<0.000000e+00> : vector<1xf32>
    %24 = vector.multi_reduction <add>, %23, %cst_18 [1] : vector<1x128xf32> to vector<1xf32>
    %25 = vector.shape_cast %24 : vector<1xf32> to vector<1x1xf32>
    %26 = arith.addf %20, %25 : vector<1x1xf32>
    %c0_19 = arith.constant 0 : index
    %c0_20 = arith.constant 0 : index
    %27 = vector.load %arg18[%c0_19, %c0_20] : memref<1x1xf32, #tpu.memory_space<vmem>>, vector<1x1xf32>
    tpu.vector_store %arg18[%c0_19, %c0_20], %26 {strides = array<i32>} : memref<1x1xf32, #tpu.memory_space<vmem>>, vector<1x1xf32>,
    %c0_21 = arith.constant 0 : index
    %c0_22 = arith.constant 0 : index
    %28 = vector.load %arg17[%c0_21, %c0_22] : memref<1x1xf32, #tpu.memory_space<vmem>>, vector<1x1xf32>
    tpu.vector_store %arg17[%c0_21, %c0_22], %16 {strides = array<i32>} : memref<1x1xf32, #tpu.memory_space<vmem>>, vector<1x1xf32>,
    %c0_i32_23 = arith.constant 0 : i32
    %29 = arith.cmpi eq, %arg0, %c0_i32_23 : i32
    %30 = arith.extui %29 : i1 to i32
    %c0_i32_24 = arith.constant 0 : i32
    %31 = arith.cmpi ne, %30, %c0_i32_24 : i32
    scf.if %31 {
      %c0_25 = arith.constant 0 : index
      %c0_26 = arith.constant 0 : index
      %32 = vector.load %arg17[%c0_25, %c0_26] : memref<1x1xf32, #tpu.memory_space<vmem>>, vector<1x1xf32>
      %c0_27 = arith.constant 0 : index
      %c0_28 = arith.constant 0 : index
      %33 = vector.load %arg18[%c0_27, %c0_28] : memref<1x1xf32, #tpu.memory_space<vmem>>, vector<1x1xf32>
      %34 = math.log %33 : vector<1x1xf32>
      %35 = arith.addf %32, %34 : vector<1x1xf32>
      %c0_29 = arith.constant 0 : index
      %c0_30 = arith.constant 0 : index
      %36 = vector.load %arg16[%c0_29, %c0_30] : memref<3x128xf32, #tpu.memory_space<vmem>>, vector<3x128xf32>
      %37 = vector.shape_cast %35 : vector<1x1xf32> to vector<1x1xf32>
      %38 = vector.broadcast %37 : vector<1x1xf32> to vector<1x128xf32>
      %39 = tpu.concatenate %36, %38 in 0 : vector<3x128xf32>, vector<1x128xf32> -> vector<4x128xf32>
      %c0_31 = arith.constant 0 : index
      %c0_32 = arith.constant 0 : index
      %40 = vector.load %arg13[%c0_31, %c0_32] : memref<4x128xf32, #tpu.memory_space<vmem>>, vector<4x128xf32>
      tpu.vector_store %arg13[%c0_31, %c0_32], %39 {strides = array<i32>} : memref<4x128xf32, #tpu.memory_space<vmem>>, vector<4x128xf32>,
    } else {
    }
    return
  }
  func.func @transform_0(%arg0: i32, %arg1: memref<1xi32, #tpu.memory_space<smem>>) -> (i32, i32, i32) {
    %c0 = arith.constant 0 : index
    %0 = memref.load %arg1[%c0] : memref<1xi32, #tpu.memory_space<smem>>
    %c0_i32 = arith.constant 0 : i32
    %c0_i32_0 = arith.constant 0 : i32
    %c0_i32_1 = arith.constant 0 : i32
    return %0, %c0_i32, %c0_i32_0 : i32, i32, i32
  }
  func.func @transform_1(%arg0: i32, %arg1: memref<1xi32, #tpu.memory_space<smem>>) -> (i32, i32) {
    %c0_i32 = arith.constant 0 : i32
    %c0_i32_0 = arith.constant 0 : i32
    %c0_i32_1 = arith.constant 0 : i32
    return %c0_i32, %c0_i32_0 : i32, i32
  }
  func.func @transform_2(%arg0: i32, %arg1: memref<1xi32, #tpu.memory_space<smem>>) -> (i32, i32) {
    %c0_i32 = arith.constant 0 : i32
    %c0_i32_0 = arith.constant 0 : i32
    %c0_i32_1 = arith.constant 0 : i32
    return %c0_i32, %c0_i32_0 : i32, i32
  }
  func.func @transform_3(%arg0: i32, %arg1: memref<1xi32, #tpu.memory_space<smem>>) -> (i32, i32) {
    %c0_i32 = arith.constant 0 : i32
    %c0_i32_0 = arith.constant 0 : i32
    %c0_i32_1 = arith.constant 0 : i32
    return %c0_i32, %c0_i32_0 : i32, i32
  }
  func.func @transform_4(%arg0: i32, %arg1: memref<1xi32, #tpu.memory_space<smem>>) -> (i32, i32) {
    %c0_i32 = arith.constant 0 : i32
    %c0_i32_0 = arith.constant 0 : i32
    %c0_i32_1 = arith.constant 0 : i32
    return %c0_i32, %c0_i32_0 : i32, i32
  }
  func.func @transform_5(%arg0: i32, %arg1: memref<1xi32, #tpu.memory_space<smem>>) -> (i32, i32) {
    %c0_i32 = arith.constant 0 : i32
    %c0_i32_0 = arith.constant 0 : i32
    %c0_i32_1 = arith.constant 0 : i32
    return %c0_i32, %c0_i32_0 : i32, i32
  }
  func.func @transform_6(%arg0: i32, %arg1: memref<1xi32, #tpu.memory_space<smem>>) -> (i32, i32) {
    %c0_i32 = arith.constant 0 : i32
    %c0_i32_0 = arith.constant 0 : i32
    %c0_i32_1 = arith.constant 0 : i32
    return %c0_i32, %c0_i32_0 : i32, i32
  }
  func.func @transform_7(%arg0: i32, %arg1: memref<1xi32, #tpu.memory_space<smem>>) -> (i32, i32) {
    %c0_i32 = arith.constant 0 : i32
    %c0_i32_0 = arith.constant 0 : i32
    return %c0_i32, %arg0 : i32, i32
  }
  func.func @transform_8(%arg0: i32, %arg1: memref<1xi32, #tpu.memory_space<smem>>) -> (i32, i32) {
    %c0_i32 = arith.constant 0 : i32
    %c0_i32_0 = arith.constant 0 : i32
    return %c0_i32, %arg0 : i32, i32
  }
  func.func @transform_9(%arg0: i32, %arg1: memref<1xi32, #tpu.memory_space<smem>>) -> (i32, i32) {
    %c0_i32 = arith.constant 0 : i32
    %c0_i32_0 = arith.constant 0 : i32
    return %c0_i32, %arg0 : i32, i32
  }
  func.func @transform_10(%arg0: i32, %arg1: memref<1xi32, #tpu.memory_space<smem>>) -> (i32, i32) {
    %c0_i32 = arith.constant 0 : i32
    %c0_i32_0 = arith.constant 0 : i32
    return %c0_i32, %arg0 : i32, i32
  }
  func.func @transform_11(%arg0: i32, %arg1: memref<1xi32, #tpu.memory_space<smem>>) -> (i32, i32) {
    %c0_i32 = arith.constant 0 : i32
    %c0_i32_0 = arith.constant 0 : i32
    %c0_i32_1 = arith.constant 0 : i32
    return %c0_i32, %c0_i32_0 : i32, i32
  }
}

</mosaic_0001>

<llo_original>
// kernel: luong_decoder_step.1
$region0: #{luong_decoder_step.1}
  #allocation0 [shape = 'u32[]', space=smem, size = 0x4, offset = 0x4, fixed_abs, tag = 'smem constant byte address 0x4 - core index']
  #allocation1 [shape = 'u32[144,128]{1,0:T(1,128)}', space=vmem, size = 0x12000, scoped, tag = 'internal scratch']
  #allocation2 [shape = 'bf16[1,32]{1,0:T(2,128)(2,1)}', space=vmem, size = 0x200, scoped, tag = 'scratch operand']
  #allocation3 [shape = 'bf16[1,32]{1,0:T(2,128)(2,1)}', space=vmem, size = 0x200, scoped, tag = 'scratch operand']
  #allocation4 [shape = 'f32[3,128]{1,0:T(4,128)}', space=vmem, size = 0x800, scoped, tag = 'scratch operand']
  #allocation5 [shape = 'f32[1,1]{1,0:T(1,128)}', space=vmem, size = 0x200, scoped, tag = 'scratch operand']
  #allocation6 [shape = 'f32[1,1]{1,0:T(1,128)}', space=vmem, size = 0x200, scoped, tag = 'scratch operand']
  #allocation7 [shape = 's32[1]{0}', space=sflag, size = 0x4, scoped, tag = 'scoped memory for luong_decoder_step.1']
  #allocation8 [shape = 's32[1]{0:T(128)S(6)}', space=smem, size = 0x200, scoped, tag = 'prefetched SMEM operand 0']
  %s0 = inlined_call_operand.<no memory space> [shape: s32[1], index: 0, kind: input, shape index: {}]
  %s1 = inlined_call_operand.vmem [shape: bf16[64,1,32], index: 1, kind: input, shape index: {}]
  %s2 = inlined_call_operand.vmem [shape: f32[1,32], index: 2, kind: input, shape index: {}]
  %s3 = inlined_call_operand.vmem [shape: f32[1,32], index: 3, kind: input, shape index: {}]
  %s4 = inlined_call_operand.vmem [shape: bf16[32,512], index: 4, kind: input, shape index: {}]
  %s5 = inlined_call_operand.hbm [shape: f32[32,512], index: 5, kind: input, shape index: {}]
  %s6 = inlined_call_operand.vmem [shape: f32[1,512], index: 6, kind: input, shape index: {}]
  %s7 = inlined_call_operand.vmem [shape: bf16[8,32], index: 7, kind: input, shape index: {}]
  %s8 = inlined_call_operand.vmem [shape: bf16[32,128], index: 8, kind: input, shape index: {}]
  %s9 = inlined_call_operand.vmem [shape: bf16[32,128], index: 9, kind: input, shape index: {}]
  %s10 = inlined_call_operand.vmem [shape: f32[1,128], index: 10, kind: input, shape index: {}]
  %s11 = inlined_call_operand.vmem [shape: f32[1,128], index: 11, kind: output, shape index: {0}]
  %s12 = inlined_call_operand.vmem [shape: f32[4,128], index: 12, kind: output, shape index: {1}]
  %13 = xla_tuple %s11, %s12
  %s14 = sld [smem:[#allocation0]]
  $region70: #{luong_decoder_step.1} parent=0
    _
  %s16 = ssub.s32 1, %s14
  %s17 = scalar_select 0, %s16, %s14
  %18 = sst [smem:[#allocation8]] %s0
  $region1: #{luong_decoder_step.1} parent=0
    #allocation9 [shape = 'u8[65536]{0}', space=vmem, size = 0x10000, scoped, tag = 'input window, operand 5, single buffered']
    #allocation10 [shape = 's32[1]{0}', space=sflag, size = 0x4, scoped, tag = 'scoped memory for luong_decoder_step.1']
    %19 = vsyncpa [#allocation10], 0
    // Predicated region
    $region2: #{luong_decoder_step.1} parent=1 // pred_check
      _
    $region3: #{luong_decoder_step.1} parent=1 // pred_check_branch
      %21 = sbr.rel (0) target = $region5
    $region4: #{luong_decoder_step.1} parent=1 // pred_region
      %s22 = sld [smem:[#allocation8]]
      %p23 = scmp.lt.s32.totalorder %s22, 63
      %s24 = scalar_select %p23, %s22, 63
      %s25 = scalar_lea.vmem %s1, %s24
      %s26 = sld [smem:[#allocation8]]
    $region5: #{luong_decoder_step.1} parent=1 // pred_fallthru
      _
    // Predicated region
    $region6: #{luong_decoder_step.1} parent=1 // pred_check
      _
    $region7: #{luong_decoder_step.1} parent=1 // pred_check_branch
      %28 = sbr.rel (0) target = $region9
    $region8: #{luong_decoder_step.1} parent=1 // pred_region
      _
    $region9: #{luong_decoder_step.1} parent=1 // pred_fallthru
      _
    // Predicated region
    $region10: #{luong_decoder_step.1} parent=1 // pred_check
      _
    $region11: #{luong_decoder_step.1} parent=1 // pred_check_branch
      %30 = sbr.rel (0) target = $region13
    $region12: #{luong_decoder_step.1} parent=1 // pred_region
      _
    $region13: #{luong_decoder_step.1} parent=1 // pred_fallthru
      _
    // Predicated region
    $region14: #{luong_decoder_step.1} parent=1 // pred_check
      _
    $region15: #{luong_decoder_step.1} parent=1 // pred_check_branch
      %32 = sbr.rel (0) target = $region17
    $region16: #{luong_decoder_step.1} parent=1 // pred_region
      _
    $region17: #{luong_decoder_step.1} parent=1 // pred_fallthru
      _
    // Predicated region
    $region18: #{luong_decoder_step.1} parent=1 // pred_check
      _
    $region19: #{luong_decoder_step.1} parent=1 // pred_check_branch
      %34 = sbr.rel (0) target = $region21
    $region20: #{luong_decoder_step.1} parent=1 // pred_region
      %s36 = ssub.s32 2048, 2048
      %37 = vsyncadd [#allocation10], %s36
      %s38 = sshll.u32 [#allocation9], 4
      %s39 = int_to_ptr.vmem [resolvable:$true] %s38
      %44 = dma.hbm_to_vmem [thread:$0]  %s5, 2048, %s39, [#allocation10], 512, 512, 32
    $region21: #{luong_decoder_step.1} parent=1 // pred_fallthru
      _
    // Predicated region
    $region22: #{luong_decoder_step.1} parent=1 // pred_check
      _
    $region23: #{luong_decoder_step.1} parent=1 // pred_check_branch
      %46 = sbr.rel (0) target = $region25
    $region24: #{luong_decoder_step.1} parent=1 // pred_region
      _
    $region25: #{luong_decoder_step.1} parent=1 // pred_fallthru
      _
    // Predicated region
    $region26: #{luong_decoder_step.1} parent=1 // pred_check
      _
    $region27: #{luong_decoder_step.1} parent=1 // pred_check_branch
      %48 = sbr.rel (0) target = $region29
    $region28: #{luong_decoder_step.1} parent=1 // pred_region
      _
    $region29: #{luong_decoder_step.1} parent=1 // pred_fallthru
      _
    // Predicated region
    $region30: #{luong_decoder_step.1} parent=1 // pred_check
      _
    $region31: #{luong_decoder_step.1} parent=1 // pred_check_branch
      %50 = sbr.rel (0) target = $region33
    $region32: #{luong_decoder_step.1} parent=1 // pred_region
      _
    $region33: #{luong_decoder_step.1} parent=1 // pred_fallthru
      _
    // Predicated region
    $region34: #{luong_decoder_step.1} parent=1 // pred_check
      _
    $region35: #{luong_decoder_step.1} parent=1 // pred_check_branch
      %52 = sbr.rel (0) target = $region37
    $region36: #{luong_decoder_step.1} parent=1 // pred_region
      _
    $region37: #{luong_decoder_step.1} parent=1 // pred_fallthru
      _
    // Predicated region
    $region38: #{luong_decoder_step.1} parent=1 // pred_check
      _
    $region39: #{luong_decoder_step.1} parent=1 // pred_check_branch
      %54 = sbr.rel (0) target = $region41
    $region40: #{luong_decoder_step.1} parent=1 // pred_region
      _
    $region41: #{luong_decoder_step.1} parent=1 // pred_fallthru
      _
    // Predicated region
    $region42: #{luong_decoder_step.1} parent=1 // pred_check
      _
    $region43: #{luong_decoder_step.1} parent=1 // pred_check_branch
      %56 = sbr.rel (0) target = $region45
    $region44: #{luong_decoder_step.1} parent=1 // pred_region
      %57 = dma.done [#allocation10], 2048
    $region45: #{luong_decoder_step.1} parent=1 // pred_fallthru
      _
    %s58 = sld [smem:[#allocation8]]
    %p59 = scmp.lt.s32.totalorder %s58, 63
    %s60 = scalar_select %p59, %s58, 63
    %s61 = scalar_lea.vmem %s1, %s60
    %s62 = sld [smem:[#allocation8]]
    %p63 = scmp.lt.s32.totalorder %s62, 63
    %s64 = scalar_select %p63, %s62, 63
    %s65 = scalar_lea.vmem %s1, %s64
    %s66 = sld [smem:[#allocation8]]
    %p68 = scmp.eq.s32.totalorder 0, 0
    // Predicated region
    $region46: #{luong_decoder_step.1} parent=1 // pred_check
      %p69 = pneg %p68
    $region47: #{luong_decoder_step.1} parent=1 // pred_check_branch
      %71 = sbr.rel (%p69) target = $region49
    $region48: #{luong_decoder_step.1} parent=1 // pred_region
      %v72 = vld [vmem:[%s65] sm:$0x1]
      %v73 = vld [vmem:[%s2] sm:$0x1]
      %v74 = vld [vmem:[%s3] sm:$0x1]
      %v75 = vld [vmem:[%s4] sm:$0xff]
      %v76 = vld [vmem:[%s4 + $0x8] sm:$0xff]
      %v77 = vld [vmem:[%s4 + $0x10] sm:$0xff]
      %v78 = vld [vmem:[%s4 + $0x18] sm:$0xff]
      %v79 = vld [vmem:[%s4 + $0x20] sm:$0xff]
      %v80 = vld [vmem:[%s4 + $0x28] sm:$0xff]
      %v81 = vld [vmem:[%s4 + $0x30] sm:$0xff]
      %v82 = vld [vmem:[%s4 + $0x38] sm:$0xff]
      %v83 = vld [vmem:[#allocation9] sm:$0xff]
      %v84 = vld [vmem:[#allocation9 + $0x8] sm:$0xff]
      %v85 = vld [vmem:[#allocation9 + $0x10] sm:$0xff]
      %v86 = vld [vmem:[#allocation9 + $0x18] sm:$0xff]
      %v87 = vld [vmem:[#allocation9 + $0x20] sm:$0xff]
      %v88 = vld [vmem:[#allocation9 + $0x28] sm:$0xff]
      %v89 = vld [vmem:[#allocation9 + $0x30] sm:$0xff]
      %v90 = vld [vmem:[#allocation9 + $0x38] sm:$0xff]
      %v91 = vld [vmem:[#allocation9 + $0x40] sm:$0xff]
      %v92 = vld [vmem:[#allocation9 + $0x48] sm:$0xff]
      %v93 = vld [vmem:[#allocation9 + $0x50] sm:$0xff]
      %v94 = vld [vmem:[#allocation9 + $0x58] sm:$0xff]
      %v95 = vld [vmem:[#allocation9 + $0x60] sm:$0xff]
      %v96 = vld [vmem:[#allocation9 + $0x68] sm:$0xff]
      %v97 = vld [vmem:[#allocation9 + $0x70] sm:$0xff]
      %v98 = vld [vmem:[#allocation9 + $0x78] sm:$0xff]
      %vm99 = vcmask 261120
      %v101 = vsel %vm99, %v73, 0
      %103 = vmatprep.subr.mxu0 %v84
      %104 = vmatpush1.msra.mxu0 %v83
      %105 = vmatprep.subr.mxu0 %v88
      %106 = vmatpush1.msra.mxu0 %v87
      %107 = vmatprep.subr.mxu0 %v92
      %108 = vmatpush1.msra.mxu0 %v91
      %109 = vmatprep.subr.mxu0 %v96
      %110 = vmatpush1.msra.mxu0 %v95
      %111 = vmatprep.subr.mxu0 0.0
      %112 = vmatpush1.msra.mxu0 0.0
      %113 = vmatprep.subr.mxu0 0.0
      %114 = vmatpush1.msra.mxu0 0.0
      %115 = vmatprep.subr.mxu0 0.0
      %116 = vmatpush1.msra.mxu0 0.0
      %117 = vmatprep.subr.mxu0 0.0
      %118 = vmatpush1.msra.mxu0 0.0
      %119 = vmatprep.subr.mxu0 0.0
      %120 = vmatpush1.msra.mxu0 0.0
      %121 = vmatprep.subr.mxu0 0.0
      %122 = vmatpush1.msra.mxu0 0.0
      %123 = vmatprep.subr.mxu0 0.0
      %124 = vmatpush1.msra.mxu0 0.0
      %125 = vmatprep.subr.mxu0 0.0
      %126 = vmatpush1.msra.mxu0 0.0
      %127 = vmatprep.subr.mxu0 0.0
      %128 = vmatpush1.msra.mxu0 0.0
      %129 = vmatprep.subr.mxu0 0.0
      %130 = vmatpush1.msra.mxu0 0.0
      %131 = vmatprep.subr.mxu0 0.0
      %132 = vmatpush1.msra.mxu0 0.0
      %133 = vmatprep.subr.mxu0 0.0
      %134 = vmatpush1.msra.mxu0 0.0
      %135 = vmatprep.subr.mxu0 0.0
      %136 = vmatpush1.msra.mxu0 0.0
      %137 = vmatprep.subr.mxu0 0.0
      %138 = vmatpush1.msra.mxu0 0.0
      %139 = vmatprep.subr.mxu0 0.0
      %140 = vmatpush1.msra.mxu0 0.0
      %141 = vmatprep.subr.mxu0 0.0
      %142 = vmatpush1.msra.mxu0 0.0
      %143 = vmatprep.subr.mxu0 0.0
      %144 = vmatpush1.msra.mxu0 0.0
      %145 = vmatprep.subr.mxu0 0.0
      %146 = vmatpush1.msra.mxu0 0.0
      %147 = vmatprep.subr.mxu0 0.0
      %148 = vmatpush1.msra.mxu0 0.0
      %149 = vmatprep.subr.mxu0 0.0
      %150 = vmatpush1.msra.mxu0 0.0
      %151 = vmatprep.subr.mxu0 0.0
      %152 = vmatpush1.msra.mxu0 0.0
      %153 = vmatprep.subr.mxu0 0.0
      %154 = vmatpush1.msra.mxu0 0.0
      %155 = vmatprep.subr.mxu0 0.0
      %156 = vmatpush1.msra.mxu0 0.0
      %157 = vmatprep.subr.mxu0 0.0
      %158 = vmatpush1.msra.mxu0 0.0
      %159 = vmatprep.subr.mxu0 0.0
      %160 = vmatpush1.msra.mxu0 0.0
      %161 = vmatprep.subr.mxu0 0.0
      %162 = vmatpush1.msra.mxu0 0.0
      %163 = vmatprep.subr.mxu0 0.0
      %164 = vmatpush1.msra.mxu0 0.0
      %165 = vmatprep.subr.mxu0 0.0
      %166 = vmatpush1.msra.mxu0 0.0
      %167 = vmatprep.mubr.f32.mxu0 0.0
      %168 = vmatmul.mubr.f32.gmra.mrb[0].mxu0 %v101
      %v169 = vpop.f32.mrb[0].mxu0
      %v170 = vadd.f32 0.0, %v169
      %v171 = vpop.f32.mrb[0].mxu0
      %v172 = vadd.f32 0.0, %v171
      %173 = vdwg.mxu0
      %174 = vmatprep.subr.mxu0 %v86
      %175 = vmatpush1.msra.mxu0 %v85
      %176 = vmatprep.subr.mxu0 %v90
      %177 = vmatpush1.msra.mxu0 %v89
      %178 = vmatprep.subr.mxu0 %v94
      %179 = vmatpush1.msra.mxu0 %v93
      %180 = vmatprep.subr.mxu0 %v98
      %181 = vmatpush1.msra.mxu0 %v97
      %182 = vmatprep.subr.mxu0 0.0
      %183 = vmatpush1.msra.mxu0 0.0
      %184 = vmatprep.subr.mxu0 0.0
      %185 = vmatpush1.msra.mxu0 0.0
      %186 = vmatprep.subr.mxu0 0.0
      %187 = vmatpush1.msra.mxu0 0.0
      %188 = vmatprep.subr.mxu0 0.0
      %189 = vmatpush1.msra.mxu0 0.0
      %190 = vmatprep.subr.mxu0 0.0
      %191 = vmatpush1.msra.mxu0 0.0
      %192 = vmatprep.subr.mxu0 0.0
      %193 = vmatpush1.msra.mxu0 0.0
      %194 = vmatprep.subr.mxu0 0.0
      %195 = vmatpush1.msra.mxu0 0.0
      %196 = vmatprep.subr.mxu0 0.0
      %197 = vmatpush1.msra.mxu0 0.0
      %198 = vmatprep.subr.mxu0 0.0
      %199 = vmatpush1.msra.mxu0 0.0
      %200 = vmatprep.subr.mxu0 0.0
      %201 = vmatpush1.msra.mxu0 0.0
      %202 = vmatprep.subr.mxu0 0.0
      %203 = vmatpush1.msra.mxu0 0.0
      %204 = vmatprep.subr.mxu0 0.0
      %205 = vmatpush1.msra.mxu0 0.0
      %206 = vmatprep.subr.mxu0 0.0
      %207 = vmatpush1.msra.mxu0 0.0
      %208 = vmatprep.subr.mxu0 0.0
      %209 = vmatpush1.msra.mxu0 0.0
      %210 = vmatprep.subr.mxu0 0.0
      %211 = vmatpush1.msra.mxu0 0.0
      %212 = vmatprep.subr.mxu0 0.0
      %213 = vmatpush1.msra.mxu0 0.0
      %214 = vmatprep.subr.mxu0 0.0
      %215 = vmatpush1.msra.mxu0 0.0
      %216 = vmatprep.subr.mxu0 0.0
      %217 = vmatpush1.msra.mxu0 0.0
      %218 = vmatprep.subr.mxu0 0.0
      %219 = vmatpush1.msra.mxu0 0.0
      %220 = vmatprep.subr.mxu0 0.0
      %221 = vmatpush1.msra.mxu0 0.0
      %222 = vmatprep.subr.mxu0 0.0
      %223 = vmatpush1.msra.mxu0 0.0
      %224 = vmatprep.subr.mxu0 0.0
      %225 = vmatpush1.msra.mxu0 0.0
      %226 = vmatprep.subr.mxu0 0.0
      %227 = vmatpush1.msra.mxu0 0.0
      %228 = vmatprep.subr.mxu0 0.0
      %229 = vmatpush1.msra.mxu0 0.0
      %230 = vmatprep.subr.mxu0 0.0
      %231 = vmatpush1.msra.mxu0 0.0
      %232 = vmatprep.subr.mxu0 0.0
      %233 = vmatpush1.msra.mxu0 0.0
      %234 = vmatprep.subr.mxu0 0.0
      %235 = vmatpush1.msra.mxu0 0.0
      %236 = vmatprep.subr.mxu0 0.0
      %237 = vmatpush1.msra.mxu0 0.0
      %238 = vmatprep.mubr.f32.mxu0 0.0
      %239 = vmatmul.mubr.f32.gmra.mrb[0].mxu0 %v101
      %v240 = vpop.f32.mrb[0].mxu0
      %v241 = vadd.f32 0.0, %v240
      %v242 = vpop.f32.mrb[0].mxu0
      %v243 = vadd.f32 0.0, %v242
      %244 = vdwg.mxu0
      %v253 = vunpack.c.l.b16 %v75
      %v254 = vunpack.c.h.b16 %v75
      %v255 = vunpack.c.l.b16 %v76
      %v256 = vunpack.c.h.b16 %v76
      %v257 = vunpack.c.l.b16 %v77
      %v258 = vunpack.c.h.b16 %v77
      %v259 = vunpack.c.l.b16 %v78
      %v260 = vunpack.c.h.b16 %v78
      %v261 = vunpack.c.l.b16 %v79
      %v262 = vunpack.c.h.b16 %v79
      %v263 = vunpack.c.l.b16 %v80
      %v264 = vunpack.c.h.b16 %v80
      %v265 = vunpack.c.l.b16 %v81
      %v266 = vunpack.c.h.b16 %v81
      %v267 = vunpack.c.l.b16 %v82
      %v268 = vunpack.c.h.b16 %v82
      %v269 = vpack.c.b16 %v257, %v253
      %v270 = vpack.c.b16 %v258, %v254
      %v271 = vpack.c.b16 %v259, %v255
      %v272 = vpack.c.b16 %v260, %v256
      %v273 = vpack.c.b16 %v265, %v261
      %v274 = vpack.c.b16 %v266, %v262
      %v275 = vpack.c.b16 %v267, %v263
      %v276 = vpack.c.b16 %v268, %v264
      %v286 = vsel %vm99, %v72, 0
      %288 = vmatprep.subr.bf16.mxu0 %v270
      %289 = vmatpush1.bf16.msra.mxu0 %v269
      %290 = vmatprep.subr.bf16.mxu0 %v274
      %291 = vmatpush1.bf16.msra.mxu0 %v273
      %292 = vmatprep.subr.bf16.mxu0 0
      %293 = vmatpush1.bf16.msra.mxu0 0
      %294 = vmatprep.subr.bf16.mxu0 0
      %295 = vmatpush1.bf16.msra.mxu0 0
      %296 = vmatprep.subr.bf16.mxu0 0
      %297 = vmatpush1.bf16.msra.mxu0 0
      %298 = vmatprep.subr.bf16.mxu0 0
      %299 = vmatpush1.bf16.msra.mxu0 0
      %300 = vmatprep.subr.bf16.mxu0 0
      %301 = vmatpush1.bf16.msra.mxu0 0
      %302 = vmatprep.subr.bf16.mxu0 0
      %303 = vmatpush1.bf16.msra.mxu0 0
      %304 = vmatprep.subr.bf16.mxu0 0
      %305 = vmatpush1.bf16.msra.mxu0 0
      %306 = vmatprep.subr.bf16.mxu0 0
      %307 = vmatpush1.bf16.msra.mxu0 0
      %308 = vmatprep.subr.bf16.mxu0 0
      %309 = vmatpush1.bf16.msra.mxu0 0
      %310 = vmatprep.subr.bf16.mxu0 0
      %311 = vmatpush1.bf16.msra.mxu0 0
      %312 = vmatprep.subr.bf16.mxu0 0
      %313 = vmatpush1.bf16.msra.mxu0 0
      %314 = vmatprep.subr.bf16.mxu0 0
      %315 = vmatpush1.bf16.msra.mxu0 0
      %316 = vmatprep.subr.bf16.mxu0 0
      %317 = vmatpush1.bf16.msra.mxu0 0
      %318 = vmatprep.subr.bf16.mxu0 0
      %319 = vmatpush1.bf16.msra.mxu0 0
      %320 = vmatprep.mubr.bf16.mxu0 0
      %321 = vmatmul.mubr.bf16.gmra.mrb[0].mxu0 %v286
      %v322 = vpop.f32.mrb[0].mxu0
      %v323 = vadd.f32 %v170, %v322
      %v324 = vpop.f32.mrb[0].mxu0
      %v325 = vadd.f32 %v172, %v324
      %v326 = vpop.f32.mrb[0].mxu0
      %v327 = vpop.f32.mrb[0].mxu0
      %328 = vdwg.mxu0
      %329 = vmatprep.subr.bf16.mxu0 %v272
      %330 = vmatpush1.bf16.msra.mxu0 %v271
      %331 = vmatprep.subr.bf16.mxu0 %v276
      %332 = vmatpush1.bf16.msra.mxu0 %v275
      %333 = vmatprep.subr.bf16.mxu0 0
      %334 = vmatpush1.bf16.msra.mxu0 0
      %335 = vmatprep.subr.bf16.mxu0 0
      %336 = vmatpush1.bf16.msra.mxu0 0
      %337 = vmatprep.subr.bf16.mxu0 0
      %338 = vmatpush1.bf16.msra.mxu0 0
      %339 = vmatprep.subr.bf16.mxu0 0
      %340 = vmatpush1.bf16.msra.mxu0 0
      %341 = vmatprep.subr.bf16.mxu0 0
      %342 = vmatpush1.bf16.msra.mxu0 0
      %343 = vmatprep.subr.bf16.mxu0 0
      %344 = vmatpush1.bf16.msra.mxu0 0
      %345 = vmatprep.subr.bf16.mxu0 0
      %346 = vmatpush1.bf16.msra.mxu0 0
      %347 = vmatprep.subr.bf16.mxu0 0
      %348 = vmatpush1.bf16.msra.mxu0 0
      %349 = vmatprep.subr.bf16.mxu0 0
      %350 = vmatpush1.bf16.msra.mxu0 0
      %351 = vmatprep.subr.bf16.mxu0 0
      %352 = vmatpush1.bf16.msra.mxu0 0
      %353 = vmatprep.subr.bf16.mxu0 0
      %354 = vmatpush1.bf16.msra.mxu0 0
      %355 = vmatprep.subr.bf16.mxu0 0
      %356 = vmatpush1.bf16.msra.mxu0 0
      %357 = vmatprep.subr.bf16.mxu0 0
      %358 = vmatpush1.bf16.msra.mxu0 0
      %359 = vmatprep.subr.bf16.mxu0 0
      %360 = vmatpush1.bf16.msra.mxu0 0
      %361 = vmatprep.mubr.bf16.mxu0 0
      %362 = vmatmul.mubr.bf16.gmra.mrb[0].mxu0 %v286
      %v363 = vpop.f32.mrb[0].mxu0
      %v364 = vadd.f32 %v241, %v363
      %v365 = vpop.f32.mrb[0].mxu0
      %v366 = vadd.f32 %v243, %v365
      %v367 = vpop.f32.mrb[0].mxu0
      %v368 = vpop.f32.mrb[0].mxu0
      %369 = vdwg.mxu0
      %v370 = vld [vmem:[%s6] sm:$0xf]
      %v372 = vlaneseq
      %v373 = vshrl.u32 %v372, 7
      %v374 = vsub.s32 0, %v373
      %v375 = vrot.slane %v370, %v374
      %v376 = vlaneseq
      %v377 = vshrl.u32 %v376, 7
      %v378 = vsub.s32 1, %v377
      %v379 = vrot.slane %v370, %v378
      %v380 = vlaneseq
      %v381 = vshrl.u32 %v380, 7
      %v382 = vsub.s32 2, %v381
      %v383 = vrot.slane %v370, %v382
      %v384 = vlaneseq
      %v385 = vshrl.u32 %v384, 7
      %v386 = vsub.s32 3, %v385
      %v387 = vrot.slane %v370, %v386
      %v392 = vadd.f32 %v323, %v375
      %v393 = vadd.f32 %v325, %v379
      %v394 = vadd.f32 %v364, %v383
      %v395 = vadd.f32 %v366, %v387
      %v396 = vxor.u32 %v392, 2147483648
      %v397 = vmul.f32 %v396, 1.442695
      %v398 = vpow.pop %v397
      %v399 = vadd.f32 %v398, 1.0
      %v400 = vrcp.pop %v399
      %v401 = vmul.f32 1.0, %v400
      %v402 = vxor.u32 %v393, 2147483648
      %v403 = vmul.f32 %v402, 1.442695
      %v404 = vpow.pop %v403
      %v405 = vadd.f32 %v404, 1.0
      %v406 = vrcp.pop %v405
      %v407 = vmul.f32 1.0, %v406
      %v408 = vtanh.pop %v394
      %v409 = vxor.u32 %v395, 2147483648
      %v410 = vmul.f32 %v409, 1.442695
      %v411 = vpow.pop %v410
      %v412 = vadd.f32 %v411, 1.0
      %v413 = vrcp.pop %v412
      %v414 = vmul.f32 1.0, %v413
      %v415 = vmul.f32 %v407, %v74
      %v416 = vmul.f32 %v401, %v408
      %v417 = vadd.f32 %v415, %v416
      %v418 = vtanh.pop %v417
      %v419 = vmul.f32 %v414, %v418
      %v420 = vpack.c.bf16 %v419, %v419
      %v421 = vld [vmem:[%s7] sm:$0xf]
      %v423 = vsel %vm99, %v420, 0
      %v426 = vsel %vm99, %v421, 0
      %428 = vmatprep.subr.bf16.mxu0 0
      %429 = vmatpush1.bf16.xpose.msra.mxu0 %v426
      %430 = vmatprep.subr.bf16.mxu0 0
      %431 = vmatpush1.bf16.xpose.msra.mxu0 0
      %432 = vmatprep.subr.bf16.mxu0 0
      %433 = vmatpush1.bf16.xpose.msra.mxu0 0
      %434 = vmatprep.subr.bf16.mxu0 0
      %435 = vmatpush1.bf16.xpose.msra.mxu0 0
      %436 = vmatprep.subr.bf16.mxu0 0
      %437 = vmatpush1.bf16.xpose.msra.mxu0 0
      %438 = vmatprep.subr.bf16.mxu0 0
      %439 = vmatpush1.bf16.xpose.msra.mxu0 0
      %440 = vmatprep.subr.bf16.mxu0 0
      %441 = vmatpush1.bf16.xpose.msra.mxu0 0
      %442 = vmatprep.subr.bf16.mxu0 0
      %443 = vmatpush1.bf16.xpose.msra.mxu0 0
      %444 = vmatprep.subr.bf16.mxu0 0
      %445 = vmatpush1.bf16.xpose.msra.mxu0 0
      %446 = vmatprep.subr.bf16.mxu0 0
      %447 = vmatpush1.bf16.xpose.msra.mxu0 0
      %448 = vmatprep.subr.bf16.mxu0 0
      %449 = vmatpush1.bf16.xpose.msra.mxu0 0
      %450 = vmatprep.subr.bf16.mxu0 0
      %451 = vmatpush1.bf16.xpose.msra.mxu0 0
      %452 = vmatprep.subr.bf16.mxu0 0
      %453 = vmatpush1.bf16.xpose.msra.mxu0 0
      %454 = vmatprep.subr.bf16.mxu0 0
      %455 = vmatpush1.bf16.xpose.msra.mxu0 0
      %456 = vmatprep.subr.bf16.mxu0 0
      %457 = vmatpush1.bf16.xpose.msra.mxu0 0
      %458 = vmatprep.subr.bf16.mxu0 0
      %459 = vmatpush1.bf16.xpose.msra.mxu0 0
      %460 = vmatprep.mubr.bf16.mxu0 0
      %461 = vmatmul.mubr.bf16.gmra.mrb[0].mxu0 %v423
      %v462 = vpop.f32.mrb[0].mxu0
      %v463 = vadd.f32 0.0, %v462
      %v464 = vpop.f32.mrb[0].mxu0
      %v465 = vpop.f32.mrb[0].mxu0
      %v466 = vpop.f32.mrb[0].mxu0
      %467 = vdwg.mxu0
      %vm468 = vcmask 57344
      %v469 = vsel %vm468, %v463, -inf
      %470 = vmax.xlane.f32.xlu0 %v469
      %v471 = vpop.xlane.xlu0 %470
      %v472 = vsub.f32 %v463, %v471
      %v473 = vmul.f32 %v472, 1.442695
      %v474 = vpow.pop %v473
      %v475 = vsel %vm468, %v474, 0.0
      %476 = vadd.xlane.f32.xlu0 %v475
      %v477 = vpop.xlane.xlu0 %476
      %v478 = vrcp.pop %v477
      %v479 = vmul.f32 %v474, %v478
      %v480 = vpack.c.bf16 %v479, %v479
      %vm481 = vcmask 64512
      %v483 = vsel %vm481, %v480, 0
      %vm485 = vcmask 1043456
      %v486 = vsel %vm485, %v421, 0
      %488 = vmatprep.subr.bf16.mxu0 0
      %489 = vmatpush1.bf16.msra.mxu0 %v486
      %490 = vmatprep.subr.bf16.mxu0 0
      %491 = vmatpush1.bf16.msra.mxu0 0
      %492 = vmatprep.subr.bf16.mxu0 0
      %493 = vmatpush1.bf16.msra.mxu0 0
      %494 = vmatprep.subr.bf16.mxu0 0
      %495 = vmatpush1.bf16.msra.mxu0 0
      %496 = vmatprep.subr.bf16.mxu0 0
      %497 = vmatpush1.bf16.msra.mxu0 0
      %498 = vmatprep.subr.bf16.mxu0 0
      %499 = vmatpush1.bf16.msra.mxu0 0
      %500 = vmatprep.subr.bf16.mxu0 0
      %501 = vmatpush1.bf16.msra.mxu0 0
      %502 = vmatprep.subr.bf16.mxu0 0
      %503 = vmatpush1.bf16.msra.mxu0 0
      %504 = vmatprep.subr.bf16.mxu0 0
      %505 = vmatpush1.bf16.msra.mxu0 0
      %506 = vmatprep.subr.bf16.mxu0 0
      %507 = vmatpush1.bf16.msra.mxu0 0
      %508 = vmatprep.subr.bf16.mxu0 0
      %509 = vmatpush1.bf16.msra.mxu0 0
      %510 = vmatprep.subr.bf16.mxu0 0
      %511 = vmatpush1.bf16.msra.mxu0 0
      %512 = vmatprep.subr.bf16.mxu0 0
      %513 = vmatpush1.bf16.msra.mxu0 0
      %514 = vmatprep.subr.bf16.mxu0 0
      %515 = vmatpush1.bf16.msra.mxu0 0
      %516 = vmatprep.subr.bf16.mxu0 0
      %517 = vmatpush1.bf16.msra.mxu0 0
      %518 = vmatprep.subr.bf16.mxu0 0
      %519 = vmatpush1.bf16.msra.mxu0 0
      %520 = vmatprep.mubr.bf16.mxu0 0
      %521 = vmatmul.mubr.bf16.gmra.mrb[0].mxu0 %v483
      %v522 = vpop.f32.mrb[0].mxu0
      %v523 = vadd.f32 0.0, %v522
      %v524 = vpop.f32.mrb[0].mxu0
      %v525 = vpop.f32.mrb[0].mxu0
      %v526 = vpop.f32.mrb[0].mxu0
      %527 = vdwg.mxu0
      %vm528 = vcmask 253952
      %vm529 = vsmask.f32 256
      %vm530 = vmand %vm528, %vm529
      %v531 = vld [vmem:[#allocation2] sm:$0x1]
      %v532 = vsel %vm530, %v420, %v531
      %533 = vst [vmem:[#allocation2] sm:$0x1] %v532
      %v534 = vpack.c.bf16 %v523, %v523
      %v535 = vld [vmem:[#allocation3] sm:$0x1]
      %v536 = vsel %vm530, %v534, %v535
      %537 = vst [vmem:[#allocation3] sm:$0x1] %v536
      %v538 = vsel %vm99, %v419, 0.0
      %v539 = vsel %vm99, %v417, 0.0
      %v540 = vsel %vm481, %v479, 0.0
      %v542 = vrot.slane %v539, 7
      %v545 = vrot.slane %v540, 6
      %vm547 = vcmask 1040384
      %v548 = vsel %vm547, %v538, %v542
      %vm549 = vcmask 1041408
      %v550 = vsel %vm549, %v548, %v545
      %551 = vst [vmem:[#allocation4] sm:$0x7] %v550
      %vm552 = vcmask 0
      %553 = vst.msk [vmem:[#allocation5] sm:$0x1] %vm552, -3.4028235e+38
      %554 = vst.msk [vmem:[#allocation6] sm:$0x1] %vm552, 0.0
    $region49: #{luong_decoder_step.1} parent=1 // pred_fallthru
      _
    %v555 = vld [vmem:[#allocation2] sm:$0x1]
    %v556 = vld [vmem:[%s8] sm:$0xf]
    %v557 = vld [vmem:[%s8 + $0x4] sm:$0xf]
    %v558 = vld [vmem:[%s8 + $0x8] sm:$0xf]
    %v559 = vld [vmem:[%s8 + $0xc] sm:$0xf]
    %v560 = vld [vmem:[#allocation3] sm:$0x1]
    %v561 = vld [vmem:[%s9] sm:$0xf]
    %v562 = vld [vmem:[%s9 + $0x4] sm:$0xf]
    %v563 = vld [vmem:[%s9 + $0x8] sm:$0xf]
    %v564 = vld [vmem:[%s9 + $0xc] sm:$0xf]
    %v569 = vunpack.c.l.b16 %v561
    %v570 = vunpack.c.l.b16 %v562
    %v571 = vunpack.c.l.b16 %v563
    %v572 = vunpack.c.l.b16 %v564
    %v573 = vpack.c.b16 %v570, %v569
    %v574 = vpack.c.b16 %v572, %v571
    %vm577 = vcmask 261120
    %v579 = vsel %vm577, %v560, 0
    %581 = vmatprep.subr.bf16.mxu0 0
    %582 = vmatpush1.bf16.msra.mxu0 %v573
    %583 = vmatprep.subr.bf16.mxu0 0
    %584 = vmatpush1.bf16.msra.mxu0 %v574
    %585 = vmatprep.subr.bf16.mxu0 0
    %586 = vmatpush1.bf16.msra.mxu0 0
    %587 = vmatprep.subr.bf16.mxu0 0
    %588 = vmatpush1.bf16.msra.mxu0 0
    %589 = vmatprep.subr.bf16.mxu0 0
    %590 = vmatpush1.bf16.msra.mxu0 0
    %591 = vmatprep.subr.bf16.mxu0 0
    %592 = vmatpush1.bf16.msra.mxu0 0
    %593 = vmatprep.subr.bf16.mxu0 0
    %594 = vmatpush1.bf16.msra.mxu0 0
    %595 = vmatprep.subr.bf16.mxu0 0
    %596 = vmatpush1.bf16.msra.mxu0 0
    %597 = vmatprep.subr.bf16.mxu0 0
    %598 = vmatpush1.bf16.msra.mxu0 0
    %599 = vmatprep.subr.bf16.mxu0 0
    %600 = vmatpush1.bf16.msra.mxu0 0
    %601 = vmatprep.subr.bf16.mxu0 0
    %602 = vmatpush1.bf16.msra.mxu0 0
    %603 = vmatprep.subr.bf16.mxu0 0
    %604 = vmatpush1.bf16.msra.mxu0 0
    %605 = vmatprep.subr.bf16.mxu0 0
    %606 = vmatpush1.bf16.msra.mxu0 0
    %607 = vmatprep.subr.bf16.mxu0 0
    %608 = vmatpush1.bf16.msra.mxu0 0
    %609 = vmatprep.subr.bf16.mxu0 0
    %610 = vmatpush1.bf16.msra.mxu0 0
    %611 = vmatprep.subr.bf16.mxu0 0
    %612 = vmatpush1.bf16.msra.mxu0 0
    %613 = vmatprep.mubr.bf16.mxu0 0
    %614 = vmatmul.mubr.bf16.gmra.mrb[0].mxu0 %v579
    %v615 = vpop.f32.mrb[0].mxu0
    %v616 = vadd.f32 0.0, %v615
    %v617 = vpop.f32.mrb[0].mxu0
    %v618 = vpop.f32.mrb[0].mxu0
    %v619 = vpop.f32.mrb[0].mxu0
    %620 = vdwg.mxu0
    %v625 = vunpack.c.l.b16 %v556
    %v626 = vunpack.c.l.b16 %v557
    %v627 = vunpack.c.l.b16 %v558
    %v628 = vunpack.c.l.b16 %v559
    %v629 = vpack.c.b16 %v626, %v625
    %v630 = vpack.c.b16 %v628, %v627
    %v634 = vsel %vm577, %v555, 0
    %636 = vmatprep.subr.bf16.mxu0 0
    %637 = vmatpush1.bf16.msra.mxu0 %v629
    %638 = vmatprep.subr.bf16.mxu0 0
    %639 = vmatpush1.bf16.msra.mxu0 %v630
    %640 = vmatprep.subr.bf16.mxu0 0
    %641 = vmatpush1.bf16.msra.mxu0 0
    %642 = vmatprep.subr.bf16.mxu0 0
    %643 = vmatpush1.bf16.msra.mxu0 0
    %644 = vmatprep.subr.bf16.mxu0 0
    %645 = vmatpush1.bf16.msra.mxu0 0
    %646 = vmatprep.subr.bf16.mxu0 0
    %647 = vmatpush1.bf16.msra.mxu0 0
    %648 = vmatprep.subr.bf16.mxu0 0
    %649 = vmatpush1.bf16.msra.mxu0 0
    %650 = vmatprep.subr.bf16.mxu0 0
    %651 = vmatpush1.bf16.msra.mxu0 0
    %652 = vmatprep.subr.bf16.mxu0 0
    %653 = vmatpush1.bf16.msra.mxu0 0
    %654 = vmatprep.subr.bf16.mxu0 0
    %655 = vmatpush1.bf16.msra.mxu0 0
    %656 = vmatprep.subr.bf16.mxu0 0
    %657 = vmatpush1.bf16.msra.mxu0 0
    %658 = vmatprep.subr.bf16.mxu0 0
    %659 = vmatpush1.bf16.msra.mxu0 0
    %660 = vmatprep.subr.bf16.mxu0 0
    %661 = vmatpush1.bf16.msra.mxu0 0
    %662 = vmatprep.subr.bf16.mxu0 0
    %663 = vmatpush1.bf16.msra.mxu0 0
    %664 = vmatprep.subr.bf16.mxu0 0
    %665 = vmatpush1.bf16.msra.mxu0 0
    %666 = vmatprep.subr.bf16.mxu0 0
    %667 = vmatpush1.bf16.msra.mxu0 0
    %668 = vmatprep.mubr.bf16.mxu0 0
    %669 = vmatmul.mubr.bf16.gmra.mrb[0].mxu0 %v634
    %v670 = vpop.f32.mrb[0].mxu0
    %v671 = vadd.f32 %v616, %v670
    %v672 = vpop.f32.mrb[0].mxu0
    %v673 = vpop.f32.mrb[0].mxu0
    %v674 = vpop.f32.mrb[0].mxu0
    %675 = vdwg.mxu0
    %v676 = vld [vmem:[%s10] sm:$0x1]
    %v677 = vadd.f32 %v671, %v676
    %678 = vst [vmem:[%s11] sm:$0x1] %v677
    %v679 = vld [vmem:[#allocation5] sm:$0x1]
    %vm680 = vcmask 1040384
    %v681 = vsel %vm680, %v677, -inf
    %682 = vmax.xlane.f32.xlu0 %v681
    %v683 = vpop.xlane.xlu0 %682
    %v684 = vmax.f32 %v679, %v683
    %v685 = vld [vmem:[#allocation6] sm:$0x1]
    %v686 = vsub.f32 %v679, %v684
    %v687 = vmul.f32 %v686, 1.442695
    %v688 = vpow.pop %v687
    %v689 = vmul.f32 %v685, %v688
    %691 = vset.pattern.permute.xlu0 0
    %692 = vperm.xlu0 %691, %v684
    %v693 = vpop.permute.xlu0 %692
    %v695 = vlaneseq
    %v696 = vshrl.u32 %v695, 7
    %v697 = vsub.s32 0, %v696
    %v698 = vrot.slane %v693, %v697
    %v699 = vsub.f32 %v677, %v698
    %v700 = vmul.f32 %v699, 1.442695
    %v701 = vpow.pop %v700
    %v702 = vsel %vm680, %v701, 0.0
    %703 = vadd.xlane.f32.xlu0 %v702
    %v704 = vpop.xlane.xlu0 %703
    %v705 = vadd.f32 %v689, %v704
    %vm706 = vcmask 0
    %707 = vst.msk [vmem:[#allocation6] sm:$0x1] %vm706, %v705
    %708 = vst.msk [vmem:[#allocation5] sm:$0x1] %vm706, %v684
    // Predicated region
    $region50: #{luong_decoder_step.1} parent=1 // pred_check
      %p709 = pneg %p68
    $region51: #{luong_decoder_step.1} parent=1 // pred_check_branch
      %711 = sbr.rel (%p709) target = $region53
    $region52: #{luong_decoder_step.1} parent=1 // pred_region
      %v712 = vld [vmem:[#allocation5] sm:$0x1]
      %v713 = vld [vmem:[#allocation6] sm:$0x1]
      %v714 = vlog2.pop %v713
      %v715 = vmul.f32 %v714, 0.6931472
      %v716 = vadd.f32 %v712, %v715
      %v717 = vld [vmem:[#allocation4] sm:$0x7]
      %719 = vset.pattern.permute.xlu0 0
      %720 = vperm.xlu0 %719, %v716
      %v721 = vpop.permute.xlu0 %720
      %v723 = vlaneseq
      %v724 = vshrl.u32 %v723, 7
      %v725 = vsub.s32 0, %v724
      %v726 = vrot.slane %v721, %v725
      %vm727 = vcmask 1042432
      %v728 = vsel %vm727, %v717, %v726
      %729 = vst [vmem:[%s12] sm:$0xf] %v728
    $region53: #{luong_decoder_step.1} parent=1 // pred_fallthru
      _
    // Predicated region
    $region54: #{luong_decoder_step.1} parent=1 // pred_check
      _
    $region55: #{luong_decoder_step.1} parent=1 // pred_check_branch
      %731 = sbr.rel (0) target = $region57
    $region56: #{luong_decoder_step.1} parent=1 // pred_region
      _
    $region57: #{luong_decoder_step.1} parent=1 // pred_fallthru
      _
    // Predicated region
    $region58: #{luong_decoder_step.1} parent=1 // pred_check
      _
    $region59: #{luong_decoder_step.1} parent=1 // pred_check_branch
      %733 = sbr.rel (0) target = $region61
    $region60: #{luong_decoder_step.1} parent=1 // pred_region
      _
    $region61: #{luong_decoder_step.1} parent=1 // pred_fallthru
      _
    // Predicated region
    $region62: #{luong_decoder_step.1} parent=1 // pred_check
      _
    $region63: #{luong_decoder_step.1} parent=1 // pred_check_branch
      %735 = sbr.rel (0) target = $region65
    $region64: #{luong_decoder_step.1} parent=1 // pred_region
      _
    $region65: #{luong_decoder_step.1} parent=1 // pred_fallthru
      _
    // Predicated region
    $region66: #{luong_decoder_step.1} parent=1 // pred_check
      _
    $region67: #{luong_decoder_step.1} parent=1 // pred_check_branch
      %737 = sbr.rel (0) target = $region69
    $region68: #{luong_decoder_step.1} parent=1 // pred_region
      _
    $region69: #{luong_decoder_step.1} parent=1 // pred_fallthru
      _
    %738 = vsyncpa [#allocation10], 1

</llo_original>
